<compile_context>
chip_gen: v7x
topology: tpu7x:2x2x1
jax: 0.10.0
libtpu: 0.0.40
codegen_flags: <defaults>
</compile_context>

<pallas_src>
import functools

import jax
import jax.numpy as jnp
from jax.experimental import pallas as pl
from jax.experimental.pallas import tpu as pltpu

_LANES = 128


def _gp_partial_ssq_kernel(g_ref, out_ref, *, rows_valid, rows_per_block,
                           steps_per_part, need_mask):
    """Accumulate lane-wise sum-of-squares partials for one row range.

    g_ref:   (B, rows_per_block, 128) block of the lane-dense gradient view
    out_ref: (1, B, 128) f32 lane-wise partial accumulator for this grid part
             (same output block revisited across the 'arbitrary' step axis,
             so it stays resident in VMEM until the part finishes).
    """
    p = pl.program_id(0)          # parallel part (TensorCore shard on v7x)
    j = pl.program_id(1)          # reduction step within the part

    @pl.when(j == 0)
    def _init():
        out_ref[...] = jnp.zeros_like(out_ref)

    g = g_ref[...].astype(jnp.float32)          # (B, T, 128)
    g2 = g * g

    if need_mask:
        # Zero contributions from rows past the logical end of the gradient
        # (ragged last block and any fully-masked overhang block). Uses the
        # *logical* block index, so clamped overhang blocks contribute zero.
        row0 = (p * steps_per_part + j) * rows_per_block
        row_ids = row0 + jax.lax.broadcasted_iota(jnp.int32, g2.shape[1:], 0)
        g2 = jnp.where((row_ids < rows_valid)[None, :, :], g2, 0.0)

    # Reduce only the row/sublane axis per step; lanes stay resident in the
    # accumulator (the cross-lane reduce happens once, in the tiny epilogue).
    out_ref[...] += jnp.sum(g2, axis=1)[None, :, :]   # (1, B, 128)


@jax.jit
def gradient_penalty_from_grad(grad_interp):
    """grad_interp: (B, C, H, W) (or any (B, ...)) -> scalar GP loss.

    Core reduction (per-sample sum of squares over D = prod(rest)) runs in Pallas;
    the tiny (B,)-sized sqrt / mean epilogue is plain JAX.
    """
    B = grad_interp.shape[0]
    g = grad_interp.reshape(B, -1)              # keep native dtype (no f32 copy in HBM)
    D = g.shape[1]

    # Lane-dense view (B, R, 128). Pad only when D is not a 128-multiple
    # (zero padding does not change the sum of squares).
    if D % _LANES:
        g = jnp.pad(g, ((0, 0), (0, _LANES - D % _LANES)))
    R = g.shape[1] // _LANES
    g = g.reshape(B, R, _LANES)

    # Block sizing: ~4 MiB per input buffer (x2 double buffering ~8 MiB) — past the
    # HBM-roofline knee, safe under the 32 MiB scoped-VMEM request on v5e/v6e/v7x.
    bytes_per_row = B * _LANES * g.dtype.itemsize
    target_block_bytes = 4 * 1024 * 1024
    t_rows = max(8, (target_block_bytes // bytes_per_row) // 8 * 8)

    if R <= t_rows:
        # Fast path: whole gradient in a single block / single grid step.
        rows_per_block, n_parts, steps_per_part = R, 1, 1
    else:
        rows_per_block = t_rows
        n_blocks = pl.cdiv(R, rows_per_block)
        n_parts = 2 if n_blocks >= 2 else 1     # v7x: shard rows across both TCs
        steps_per_part = pl.cdiv(n_blocks, n_parts)

    n_blocks_total = pl.cdiv(R, rows_per_block)
    rows_covered = n_parts * steps_per_part * rows_per_block
    need_mask = rows_covered != R

    def g_index_map(p, j):
        # Clamp so a (fully masked) overhang block never indexes out of bounds.
        blk = p * steps_per_part + j
        return (0, jnp.minimum(blk, n_blocks_total - 1), 0)

    kernel = functools.partial(
        _gp_partial_ssq_kernel,
        rows_valid=R,
        rows_per_block=rows_per_block,
        steps_per_part=steps_per_part,
        need_mask=need_mask,
    )

    partials = pl.pallas_call(
        kernel,
        out_shape=jax.ShapeDtypeStruct((n_parts, B, _LANES), jnp.float32),
        grid_spec=pltpu.PrefetchScalarGridSpec(
            num_scalar_prefetch=0,
            grid=(n_parts, steps_per_part),
            in_specs=[pl.BlockSpec((B, rows_per_block, _LANES), g_index_map)],
            out_specs=pl.BlockSpec((1, B, _LANES), lambda p, j: (p, 0, 0)),
        ),
        compiler_params=pltpu.CompilerParams(
            dimension_semantics=("parallel", "arbitrary"),
            vmem_limit_bytes=32 * 1024 * 1024,
        ),
    )(g)

    ssq = partials.sum(axis=(0, 2))             # (B,) per-sample ||g||^2
    return jnp.mean((jnp.sqrt(ssq) - 1.0) ** 2)


def gradient_penalty_loss(critic_fn, interp):
    """Full GradientPenaltyLoss.forward equivalent.

    torch.autograd.grad(...) has no Pallas equivalent; it is realized via jax.vjp
    with grad_outputs = ones_like(interp_crit), then the penalty reduction runs
    in the Pallas kernel above.
    """
    interp_crit, vjp_fn = jax.vjp(critic_fn, interp)
    grad_outputs = jnp.ones_like(interp_crit)   # get_grad_outputs(interp_crit)
    (grad_interp,) = vjp_fn(grad_outputs)
    return gradient_penalty_from_grad(grad_interp)


if __name__ == "__main__":
    key = jax.random.PRNGKey(0)
    k_x, k_w, k_big = jax.random.split(key, 3)

    # --- Small NCHW demo consistent with the module (single-block fast path). ---
    B, C, H, W = 2, 4, 16, 16
    interp = jax.random.normal(k_x, (B, C, H, W), dtype=jnp.float32)

    # Deterministic synthetic "critic": linear map to a per-sample scalar.
    D = C * H * W
    w_crit = jax.random.normal(k_w, (D, 1), dtype=jnp.float32) * 0.05

    def critic_fn(x):
        return x.reshape(x.shape[0], -1) @ w_crit   # (B, 1)

    loss = jax.block_until_ready(gradient_penalty_loss(critic_fn, interp))

    # Pure-JAX reference of the full forward.
    _, vjp_fn = jax.vjp(critic_fn, interp)
    (g_ref,) = vjp_fn(jnp.ones((B, 1), jnp.float32))
    g_ref = g_ref.reshape(B, -1)
    ref = jnp.mean((jnp.linalg.norm(g_ref, axis=1) - 1.0) ** 2)
    assert jnp.allclose(loss, ref, rtol=1e-5, atol=1e-6), (loss, ref)

    # --- Larger gradient: exercises multi-block, 2-part grid and masked tail. ---
    big = jax.random.normal(k_big, (2, 8, 272, 256), dtype=jnp.float32) * 0.01
    loss_big = jax.block_until_ready(gradient_penalty_from_grad(big))
    gb = big.reshape(2, -1)
    ref_big = jnp.mean((jnp.linalg.norm(gb, axis=1) - 1.0) ** 2)
    assert jnp.allclose(loss_big, ref_big, rtol=2e-3, atol=1e-5), (loss_big, ref_big)

    print("KERNEL_OK")
</pallas_src>

<mosaic_0001>
module attributes {stable_mosaic.version = 11 : i64} {
  func.func @_gp_partial_ssq_kernel(%arg0: i32, %arg1: i32, %arg2: memref<2x8x128xf32, #tpu.memory_space<vmem>>, %arg3: memref<1x2x128xf32, #tpu.memory_space<vmem>>) attributes {dimension_semantics = [#tpu.dimension_semantics<parallel>, #tpu.dimension_semantics<arbitrary>], iteration_bounds = array<i64: 1, 1>, scalar_prefetch = 0 : i64, scratch_operands = 0 : i64, tpu.core_type = #tpu.core_type<tc>, window_params = [{transform_indices = @transform_0, window_bounds = array<i64: 2, 8, 128>}, {transform_indices = @transform_1, window_bounds = array<i64: 1, 2, 128>}]} {
    %c0_i32 = arith.constant 0 : i32
    %0 = arith.cmpi eq, %arg1, %c0_i32 : i32
    %1 = arith.extui %0 : i1 to i32
    %c0_i32_0 = arith.constant 0 : i32
    %2 = arith.cmpi ne, %1, %c0_i32_0 : i32
    scf.if %2 {
      %cst_9 = arith.constant 0.000000e+00 : f32
      %10 = vector.broadcast %cst_9 : f32 to vector<1x2x128xf32>
      %c0_10 = arith.constant 0 : index
      %c0_11 = arith.constant 0 : index
      %c0_12 = arith.constant 0 : index
      %11 = vector.load %arg3[%c0_10, %c0_11, %c0_12] : memref<1x2x128xf32, #tpu.memory_space<vmem>>, vector<1x2x128xf32>
      tpu.vector_store %arg3[%c0_10, %c0_11, %c0_12], %10 {strides = array<i32>} : memref<1x2x128xf32, #tpu.memory_space<vmem>>, vector<1x2x128xf32>,
    } else {
    }
    %c0 = arith.constant 0 : index
    %c0_1 = arith.constant 0 : index
    %c0_2 = arith.constant 0 : index
    %3 = vector.load %arg2[%c0, %c0_1, %c0_2] : memref<2x8x128xf32, #tpu.memory_space<vmem>>, vector<2x8x128xf32>
    %4 = arith.mulf %3, %3 : vector<2x8x128xf32>
    %c0_3 = arith.constant 0 : index
    %c0_4 = arith.constant 0 : index
    %c0_5 = arith.constant 0 : index
    %5 = vector.load %arg3[%c0_3, %c0_4, %c0_5] : memref<1x2x128xf32, #tpu.memory_space<vmem>>, vector<1x2x128xf32>
    %cst = arith.constant dense<0.000000e+00> : vector<2x128xf32>
    %6 = vector.multi_reduction <add>, %4, %cst [1] : vector<2x8x128xf32> to vector<2x128xf32>
    %7 = vector.shape_cast %6 : vector<2x128xf32> to vector<1x2x128xf32>
    %8 = arith.addf %5, %7 : vector<1x2x128xf32>
    %c0_6 = arith.constant 0 : index
    %c0_7 = arith.constant 0 : index
    %c0_8 = arith.constant 0 : index
    %9 = vector.load %arg3[%c0_6, %c0_7, %c0_8] : memref<1x2x128xf32, #tpu.memory_space<vmem>>, vector<1x2x128xf32>
    tpu.vector_store %arg3[%c0_6, %c0_7, %c0_8], %8 {strides = array<i32>} : memref<1x2x128xf32, #tpu.memory_space<vmem>>, vector<1x2x128xf32>,
    return
  }
  func.func @transform_0(%arg0: i32, %arg1: i32) -> (i32, i32, i32) {
    %c1_i32 = arith.constant 1 : i32
    %0 = arith.muli %arg0, %c1_i32 : i32
    %1 = arith.addi %0, %arg1 : i32
    %c0_i32 = arith.constant 0 : i32
    %2 = arith.minsi %1, %c0_i32 : i32
    %c0_i32_0 = arith.constant 0 : i32
    %c0_i32_1 = arith.constant 0 : i32
    %c0_i32_2 = arith.constant 0 : i32
    return %c0_i32_0, %2, %c0_i32_1 : i32, i32, i32
  }
  func.func @transform_1(%arg0: i32, %arg1: i32) -> (i32, i32, i32) {
    %c0_i32 = arith.constant 0 : i32
    %c0_i32_0 = arith.constant 0 : i32
    %c0_i32_1 = arith.constant 0 : i32
    return %arg0, %c0_i32, %c0_i32_0 : i32, i32, i32
  }
}

</mosaic_0001>

<llo_original>
// kernel: gradient_penalty_from_grad.1
$region0: #{gradient_penalty_from_grad.1}
  #allocation0 [shape = 'u32[]', space=smem, size = 0x4, offset = 0x4, fixed_abs, tag = 'smem constant byte address 0x4 - core index']
  #allocation1 [shape = 'u32[144,128]{1,0:T(1,128)}', space=vmem, size = 0x12000, scoped, tag = 'internal scratch']
  %s0 = inlined_call_operand.vmem [shape: f32[2,8,128], index: 0, kind: input, shape index: {}]
  %s1 = inlined_call_operand.vmem [shape: f32[1,2,128], index: 1, kind: output, shape index: {}]
  %s2 = sld [smem:[#allocation0]]
  $region18: #{gradient_penalty_from_grad.1} parent=0
    _
  %s4 = ssub.s32 1, %s2
  %s5 = scalar_select 0, %s4, %s2
  // Predicated region
  $region2: #{gradient_penalty_from_grad.1} parent=0 // pred_check
    _
  $region3: #{gradient_penalty_from_grad.1} parent=0 // pred_check_branch
    %7 = sbr.rel (0) target = $region5
  $region4: #{gradient_penalty_from_grad.1} parent=0 // pred_region
    %s8 = sadd.s32 0, 0
    %p9 = scmp.lt.s32.totalorder %s8, 0
    %s10 = scalar_select %p9, %s8, 0
    %p11 = scmp.lt.s32.totalorder %s10, 0
    %s12 = scalar_select %p11, %s10, 0
    %s13 = smul.addr %s12, 8
    %s14 = scalar_lea.vmem %s0, %s13
    %s15 = sadd.s32 0, 0
    %p16 = scmp.lt.s32.totalorder %s15, 0
    %s17 = scalar_select %p16, %s15, 0
  $region5: #{gradient_penalty_from_grad.1} parent=0 // pred_fallthru
    _
  %s18 = sadd.s32 0, 0
  %p19 = scmp.lt.s32.totalorder %s18, 0
  %s20 = scalar_select %p19, %s18, 0
  %p21 = scmp.lt.s32.totalorder %s20, 0
  %s22 = scalar_select %p21, %s20, 0
  %s23 = smul.addr %s22, 8
  %s24 = scalar_lea.vmem %s0, %s23
  %s25 = sadd.s32 0, 0
  %p26 = scmp.lt.s32.totalorder %s25, 0
  %s27 = scalar_select %p26, %s25, 0
  %p28 = scmp.lt.s32.totalorder %s27, 0
  %s29 = scalar_select %p28, %s27, 0
  %s30 = smul.addr %s29, 8
  %s31 = scalar_lea.vmem %s0, %s30
  %s32 = sadd.s32 0, 0
  %p33 = scmp.lt.s32.totalorder %s32, 0
  %s34 = scalar_select %p33, %s32, 0
  %p35 = scmp.eq.s32.totalorder 0, 0
  // Predicated region
  $region6: #{gradient_penalty_from_grad.1} parent=0 // pred_check
    %p36 = pneg %p35
  $region7: #{gradient_penalty_from_grad.1} parent=0 // pred_check_branch
    %38 = sbr.rel (%p36) target = $region9
  $region8: #{gradient_penalty_from_grad.1} parent=0 // pred_region
    %39 = vst [vmem:[%s1] sm:$0x3] 0.0
  $region9: #{gradient_penalty_from_grad.1} parent=0 // pred_fallthru
    _
  %v40 = vld [vmem:[%s31] sm:$0xff]
  %v41 = vld [vmem:[%s31 + $0x8] sm:$0xff]
  %v42 = vmul.f32 %v40, %v40
  %v43 = vmul.f32 %v41, %v41
  %v44 = vld [vmem:[%s1] sm:$0x3]
  %v45 = vrot.slane %v42, 4
  %v46 = vadd.f32 %v42, %v45
  %v47 = vrot.slane %v46, 2
  %v48 = vadd.f32 %v46, %v47
  %v49 = vrot.slane %v48, 1
  %v50 = vadd.f32 %v48, %v49
  %v51 = vrot.slane %v43, 4
  %v52 = vadd.f32 %v43, %v51
  %v53 = vrot.slane %v52, 2
  %v54 = vadd.f32 %v52, %v53
  %v55 = vrot.slane %v54, 1
  %v56 = vadd.f32 %v54, %v55
  %vm59 = vcmask 1041409
  %v60 = vsel %vm59, %v56, %v50
  %v62 = vadd.f32 %v44, %v60
  %63 = vst [vmem:[%s1] sm:$0x3] %v62
  // Predicated region
  $region10: #{gradient_penalty_from_grad.1} parent=0 // pred_check
    _
  $region11: #{gradient_penalty_from_grad.1} parent=0 // pred_check_branch
    %65 = sbr.rel (0) target = $region13
  $region12: #{gradient_penalty_from_grad.1} parent=0 // pred_region
    _
  $region13: #{gradient_penalty_from_grad.1} parent=0 // pred_fallthru
    _
  // Predicated region
  $region14: #{gradient_penalty_from_grad.1} parent=0 // pred_check
    _
  $region15: #{gradient_penalty_from_grad.1} parent=0 // pred_check_branch
    %67 = sbr.rel (0) target = $region17
  $region16: #{gradient_penalty_from_grad.1} parent=0 // pred_region
    _
  $region17: #{gradient_penalty_from_grad.1} parent=0 // pred_fallthru
    _

</llo_original>
